<compile_context>
chip_gen: v6e
topology: v6e:2x2x1
jax: 0.10.0
libtpu: 0.0.40
codegen_flags: <defaults>
</compile_context>

<pallas_src>
import functools

import jax
import jax.numpy as jnp
from jax.experimental import pallas as pl
from jax.experimental.pallas import tpu as pltpu


# ----------------------------------------------------------------------------
# Reduced hyper-parameters
# ----------------------------------------------------------------------------
IMG = 16
IN_CH = 3
STEM1_CH = 32
STEM2_CH = 64
HIDDEN = 128          # real: 768
HEADS = 4             # real: 12
HEAD_DIM = HIDDEN // HEADS
MLP_DIM = 4 * HIDDEN
DEPTH = 2             # real: 12
GRID_HW = IMG // 4    # two stride-2 convs -> 4x4 feature map
NUM_TOKENS = GRID_HW * GRID_HW + 1
LN_EPS = 1e-6

# Tile caps. VMEM budget per matmul step: 2x-buffered bf16 A/B
# (2*(tm*tk + tk*tn)*2 B) plus f32 acc + out + bf16 residual tiles
# (~(4+2*out+2)*tm*tn B) -- comfortably inside v7x's 64 MiB at these caps,
# while 256/512/1024 tiles keep the MXU near roofline on v5e/v6e.
TM_MAX = 256
TN_MAX = 512
TK_MAX = 1024


# ----------------------------------------------------------------------------
# Tile pickers: pad the array up to a multiple of the chosen tile.
# ----------------------------------------------------------------------------
def _round_up(x, m):
    return ((x + m - 1) // m) * m


def _pick_tile_m(dim, max_tile=TM_MAX):
    if dim <= max_tile:
        return dim, dim                      # full-dim block is always legal
    tile = max(16, (max_tile // 16) * 16)    # multiple of 16 for bf16 sublanes
    return tile, _round_up(dim, tile)


def _pick_tile_k(dim, max_tile=TK_MAX):
    if dim <= max_tile:
        return dim, dim                      # full K -> no K grid axis at all
    tile = max(256, (max_tile // 256) * 256)  # multiple of 256 for v6e/v7x MXU
    return tile, _round_up(dim, tile)


def _pick_tile_n(dim, max_tile=TN_MAX):
    if dim < 128:
        return 128, 128                      # lane-dense stores
    if dim <= max_tile:
        return dim, dim
    tile = max(128, (max_tile // 128) * 128)
    return tile, _round_up(dim, tile)


def pack_linear(w, b):
    """Pre-cast a (K, N) weight to bf16 and lane/contraction-pad it ONCE."""
    K, N = w.shape
    _, Kp = _pick_tile_k(K)
    _, Np = _pick_tile_n(N)
    w_p = w.astype(jnp.bfloat16)
    if (Kp, Np) != (K, N):
        w_p = jnp.pad(w_p, ((0, Kp - K), (0, Np - N)))
    b_p = b.astype(jnp.float32).reshape(1, N)
    if Np != N:
        b_p = jnp.pad(b_p, ((0, 0), (0, Np - N)))
    return {"w": w_p, "b": b_p, "K": K, "N": N}


# ----------------------------------------------------------------------------
# Fused matmul kernel: [LayerNorm(A)] @ W + bias [+act] [+residual]
# ----------------------------------------------------------------------------
def _matmul_kernel(*refs, act, has_residual, has_ln, eps, nk):
    a_ref, b_ref, bias_ref = refs[:3]
    idx = 3
    g_ref = beta_ref = res_ref = None
    if has_ln:
        g_ref, beta_ref = refs[idx], refs[idx + 1]
        idx += 2
    if has_residual:
        res_ref = refs[idx]
        idx += 1
    o_ref = refs[idx]
    acc_ref = refs[idx + 1] if nk > 1 else None

    a = a_ref[...]
    if has_ln:
        # Pre-norm LayerNorm fused into the prologue (a_ref holds the full K).
        x = a.astype(jnp.float32)
        mu = jnp.mean(x, axis=-1, keepdims=True)
        var = jnp.mean(jnp.square(x - mu), axis=-1, keepdims=True)
        x = (x - mu) * jax.lax.rsqrt(var + eps)
        a = (x * g_ref[...] + beta_ref[...]).astype(jnp.bfloat16)

    part = jnp.dot(a, b_ref[...], preferred_element_type=jnp.float32)

    def _epilogue(acc):
        acc = acc + bias_ref[...]
        if act == "relu":
            acc = jnp.maximum(acc, 0.0)
        elif act == "gelu":
            acc = jax.nn.gelu(acc, approximate=False)  # timm uses erf-GELU
        if has_residual:
            acc = acc + res_ref[...].astype(jnp.float32)
        o_ref[...] = acc.astype(o_ref.dtype)

    if nk == 1:
        # Full-K block: no accumulator revisits, no init/finalize.
        _epilogue(part)
    else:
        k = pl.program_id(2)

        @pl.when(k == 0)
        def _():
            acc_ref[...] = jnp.zeros_like(acc_ref)

        acc_ref[...] += part

        @pl.when(k == pl.num_programs(2) - 1)
        def _():
            _epilogue(acc_ref[...])


def matmul_bias_act(a, lin, act="none", residual=None, ln=None,
                    out_dtype=jnp.bfloat16):
    """out = act( [LN(a)] @ lin.w + lin.b ) [+ residual].

    a: (M, K) activation (any float dtype; fed to the MXU as bf16).
    lin: dict from pack_linear (pre-cast / pre-padded bf16 weight, f32 bias).
    ln: optional (gamma, beta) of shape (1, K) -> fuse pre-norm LayerNorm.
    residual: optional (M, N), added after the (act='none') epilogue.
    """
    M, K = a.shape
    assert K == lin["K"], (K, lin["K"])
    N = lin["N"]
    w_p, bias_p = lin["w"], lin["b"]
    Kp, Np = w_p.shape

    has_residual = residual is not None
    has_ln = ln is not None
    # Residual is added AFTER the activation; only act='none' call sites exist.
    assert not (has_residual and act != "none"), "act+residual ordering footgun"

    tm, Mp = _pick_tile_m(M)
    tk, _Kp = _pick_tile_k(K)
    tn, _Np = _pick_tile_n(N)
    assert (_Kp, _Np) == (Kp, Np), "weight was packed with different tile caps"
    if has_ln:
        assert tk == K == Kp, "LayerNorm fusion needs a full-K A block"

    a_p = a.astype(jnp.bfloat16)
    if (Mp, Kp) != (M, K):
        a_p = jnp.pad(a_p, ((0, Mp - M), (0, Kp - K)))

    in_specs = [
        pl.BlockSpec((tm, tk), lambda i, j, k: (i, k)),
        pl.BlockSpec((tk, tn), lambda i, j, k: (k, j)),
        pl.BlockSpec((1, tn), lambda i, j, k: (0, j)),
    ]
    inputs = [a_p, w_p, bias_p]

    if has_ln:
        g, beta = ln
        in_specs += [pl.BlockSpec((1, tk), lambda i, j, k: (0, 0)),
                     pl.BlockSpec((1, tk), lambda i, j, k: (0, 0))]
        inputs += [g, beta]

    if has_residual:
        res_p = residual.astype(jnp.bfloat16)
        if (Mp, Np) != (M, N):
            res_p = jnp.pad(res_p, ((0, Mp - M), (0, Np - N)))
        in_specs.append(pl.BlockSpec((tm, tn), lambda i, j, k: (i, j)))
        inputs.append(res_p)

    nk = Kp // tk
    out_bytes = jnp.dtype(out_dtype).itemsize
    vmem_est = (2 * (tm * tk + tk * tn) * 2      # double-buffered bf16 A / B
                + 2 * tm * tn * out_bytes        # double-buffered output tile
                + tm * tn * 4                    # f32 accumulator scratch
                + 4 * tn * 4)                    # bias / LN rows
    if has_residual:
        vmem_est += 2 * tm * tn * 2
    vmem_limit = int(max(32 * 1024 * 1024, min(2 * vmem_est, 64 * 1024 * 1024)))

    out = pl.pallas_call(
        functools.partial(_matmul_kernel, act=act, has_residual=has_residual,
                          has_ln=has_ln, eps=LN_EPS, nk=nk),
        out_shape=jax.ShapeDtypeStruct((Mp, Np), out_dtype),
        grid=(Mp // tm, Np // tn, nk),
        in_specs=in_specs,
        out_specs=pl.BlockSpec((tm, tn), lambda i, j, k: (i, j)),
        scratch_shapes=([pltpu.VMEM((tm, tn), jnp.float32)] if nk > 1 else []),
        compiler_params=pltpu.CompilerParams(
            dimension_semantics=("parallel", "parallel", "arbitrary"),
            vmem_limit_bytes=vmem_limit),
    )(*inputs)

    if (Mp, Np) != (M, N):
        out = out[:M, :N]
    return out


# ----------------------------------------------------------------------------
# Fused multi-head self-attention, heads packed into 128-lane groups
# ----------------------------------------------------------------------------
def _attention_kernel(q_ref, k_ref, v_ref, o_ref, *, group_heads, head_dim,
                      scale):
    # Scale folded into Q (T x head_dim mults instead of T x T on the scores).
    q = q_ref[0] * scale          # (T, group_heads*head_dim), bf16
    kk = k_ref[0]
    vv = v_ref[0]
    outs = []
    for h in range(group_heads):  # small, bounded unroll (2-4 heads per group)
        sl = slice(h * head_dim, (h + 1) * head_dim)
        s = jax.lax.dot_general(q[:, sl], kk[:, sl], (((1,), (1,)), ((), ())),
                                preferred_element_type=jnp.float32)
        s = s - jnp.max(s, axis=-1, keepdims=True)
        p = jnp.exp(s)
        p = p * pl.reciprocal(jnp.sum(p, axis=-1, keepdims=True), approx=True)
        outs.append(jnp.dot(p.astype(vv.dtype), vv[:, sl],
                            preferred_element_type=jnp.float32))
    # One lane-dense (>=128-wide) store per head group.
    o_ref[0] = jnp.concatenate(outs, axis=-1).astype(o_ref.dtype)


def fused_mhsa(qkv, heads, head_dim, scale):
    """qkv: (B, T, 3*D) bf16 -> attention output (B, T, D) bf16.

    Q/K/V slabs are read straight from the packed qkv activation via per-group
    BlockSpec column index_maps (no JAX-side reshape/transpose of qkv).
    """
    B, T, three_d = qkv.shape
    D = heads * head_dim
    assert three_d == 3 * D
    group_heads = min(heads, max(1, 128 // head_dim))
    while heads % group_heads:
        group_heads -= 1
    gw = group_heads * head_dim
    assert gw % 128 == 0, "head groups must be 128-lane aligned"
    n_groups = heads // group_heads
    kb = D // gw  # block offset of K (and 2*kb for V) inside packed qkv

    return pl.pallas_call(
        functools.partial(_attention_kernel, group_heads=group_heads,
                          head_dim=head_dim, scale=scale),
        out_shape=jax.ShapeDtypeStruct((B, T, D), jnp.bfloat16),
        grid=(B, n_groups),
        in_specs=[
            pl.BlockSpec((1, T, gw), lambda b, g: (b, 0, g)),            # Q
            pl.BlockSpec((1, T, gw), lambda b, g: (b, 0, kb + g)),       # K
            pl.BlockSpec((1, T, gw), lambda b, g: (b, 0, 2 * kb + g)),   # V
        ],
        out_specs=pl.BlockSpec((1, T, gw), lambda b, g: (b, 0, g)),
        compiler_params=pltpu.CompilerParams(
            dimension_semantics=("parallel", "parallel")),
    )(qkv, qkv, qkv)


# ----------------------------------------------------------------------------
# Final LayerNorm + Linear(D, 1) + sigmoid fused on the cls rows only
# ----------------------------------------------------------------------------
def _ln_head_sigmoid_kernel(x_ref, g_ref, b_ref, w_ref, hb_ref, o_ref, *, eps):
    x = x_ref[...].astype(jnp.float32)
    mu = jnp.mean(x, axis=-1, keepdims=True)
    var = jnp.mean(jnp.square(x - mu), axis=-1, keepdims=True)
    y = (x - mu) * jax.lax.rsqrt(var + eps)
    y = y * g_ref[...] + b_ref[...]
    logit = jnp.sum(y * w_ref[...], axis=-1, keepdims=True) + hb_ref[...]
    o_ref[...] = jax.nn.sigmoid(logit)


def ln_head_sigmoid(cls_tokens, gamma, beta, head_w, head_b):
    B, D = cls_tokens.shape
    return pl.pallas_call(
        functools.partial(_ln_head_sigmoid_kernel, eps=LN_EPS),
        out_shape=jax.ShapeDtypeStruct((B, 1), jnp.float32),
        grid=(1,),
        in_specs=[
            pl.BlockSpec((B, D), lambda i: (0, 0)),
            pl.BlockSpec((1, D), lambda i: (0, 0)),
            pl.BlockSpec((1, D), lambda i: (0, 0)),
            pl.BlockSpec((1, D), lambda i: (0, 0)),
            pl.BlockSpec((1, 1), lambda i: (0, 0)),
        ],
        out_specs=pl.BlockSpec((B, 1), lambda i: (0, 0)),
    )(cls_tokens, gamma, beta, head_w, head_b)


# ----------------------------------------------------------------------------
# Glue: im2col so convolutions become Pallas matmuls
# ----------------------------------------------------------------------------
def im2col(x, kh, kw, stride, padding):
    """x: NHWC -> (patches (B*Ho*Wo, kh*kw*C), Ho, Wo), (ki, kj, c) order."""
    # TODO(synk): at real R50 backbone sizes (384x384) plain-JAX im2col blows up
    # activation HBM traffic by kh*kw; hand the stem to XLA's conv or write a
    # Pallas conv gathering patches via spatial index_maps instead.
    B, H, W, C = x.shape
    xp = jnp.pad(x, ((0, 0), (padding, padding), (padding, padding), (0, 0)))
    Ho = (H + 2 * padding - kh) // stride + 1
    Wo = (W + 2 * padding - kw) // stride + 1
    cols = []
    for i in range(kh):
        for j in range(kw):
            cols.append(
                xp[:, i:i + (Ho - 1) * stride + 1:stride,
                      j:j + (Wo - 1) * stride + 1:stride, :])
    patches = jnp.concatenate(cols, axis=-1)
    return patches.reshape(B * Ho * Wo, kh * kw * C), Ho, Wo


def conv2d(x, lin, kh, kw, stride, padding, act="none"):
    patches, Ho, Wo = im2col(x, kh, kw, stride, padding)
    out = matmul_bias_act(patches, lin, act=act, out_dtype=jnp.bfloat16)
    return out.reshape(x.shape[0], Ho, Wo, lin["N"])


# ----------------------------------------------------------------------------
# Parameters (weights pre-cast / pre-padded at init, not per forward)
# ----------------------------------------------------------------------------
def init_params(key):
    def nrm(k, shape, scale=0.02):
        return scale * jax.random.normal(k, shape, dtype=jnp.float32)

    ks = iter(jax.random.split(key, 64))
    p = {}
    w = nrm(next(ks), (3, 3, IN_CH, STEM1_CH))
    p["stem1"] = pack_linear(w.reshape(-1, STEM1_CH),
                             jnp.zeros((STEM1_CH,), jnp.float32))
    w = nrm(next(ks), (3, 3, STEM1_CH, STEM2_CH))
    p["stem2"] = pack_linear(w.reshape(-1, STEM2_CH),
                             jnp.zeros((STEM2_CH,), jnp.float32))
    w = nrm(next(ks), (1, 1, STEM2_CH, HIDDEN))      # hybrid patch_embed.proj
    p["patch"] = pack_linear(w.reshape(-1, HIDDEN),
                             jnp.zeros((HIDDEN,), jnp.float32))
    p["cls_token"] = nrm(next(ks), (1, 1, HIDDEN))
    p["pos_embed"] = nrm(next(ks), (1, NUM_TOKENS, HIDDEN))
    p["blocks"] = []
    for _ in range(DEPTH):
        p["blocks"].append({
            "ln1_g": jnp.ones((1, HIDDEN), jnp.float32),
            "ln1_b": jnp.zeros((1, HIDDEN), jnp.float32),
            "qkv": pack_linear(nrm(next(ks), (HIDDEN, 3 * HIDDEN)),
                               jnp.zeros((3 * HIDDEN,), jnp.float32)),
            "proj": pack_linear(nrm(next(ks), (HIDDEN, HIDDEN)),
                                jnp.zeros((HIDDEN,), jnp.float32)),
            "ln2_g": jnp.ones((1, HIDDEN), jnp.float32),
            "ln2_b": jnp.zeros((1, HIDDEN), jnp.float32),
            "fc1": pack_linear(nrm(next(ks), (HIDDEN, MLP_DIM)),
                               jnp.zeros((MLP_DIM,), jnp.float32)),
            "fc2": pack_linear(nrm(next(ks), (MLP_DIM, HIDDEN)),
                               jnp.zeros((HIDDEN,), jnp.float32)),
        })
    p["norm_g"] = jnp.ones((1, HIDDEN), jnp.float32)
    p["norm_b"] = jnp.zeros((1, HIDDEN), jnp.float32)
    p["head_w"] = nrm(next(ks), (1, HIDDEN))   # row layout: head fused as dot
    p["head_b"] = jnp.zeros((1, 1), jnp.float32)
    return p


# ----------------------------------------------------------------------------
# Forward: reduced vit_base_r50_s16-style hybrid ViT + Linear(D,1) + sigmoid
# ----------------------------------------------------------------------------
def vit_h_14_forward(params, x_nchw):
    """x_nchw: (B, C, H, W) float32 (PyTorch layout) -> sigmoid logits (B, 1)."""
    B = x_nchw.shape[0]
    x = jnp.transpose(x_nchw, (0, 2, 3, 1))                     # NCHW -> NHWC

    # "backbone" conv stem (reduced R50 stand-in) + 1x1 patch-embed projection
    x = conv2d(x, params["stem1"], 3, 3, stride=2, padding=1, act="relu")
    x = conv2d(x, params["stem2"], 3, 3, stride=2, padding=1, act="relu")
    x = conv2d(x, params["patch"], 1, 1, stride=1, padding=0, act="none")

    # tokens: cls token prepended + positional embedding (plain-JAX glue)
    tok = x.reshape(B, GRID_HW * GRID_HW, HIDDEN).astype(jnp.float32)
    cls = jnp.broadcast_to(params["cls_token"], (B, 1, HIDDEN))
    tok = jnp.concatenate([cls, tok], axis=1) + params["pos_embed"]
    T = tok.shape[1]

    scale = HEAD_DIM ** -0.5
    h = tok.reshape(B * T, HIDDEN).astype(jnp.bfloat16)   # bf16 residual stream
    for blk in params["blocks"]:
        # attention sub-block: LN1 fused into the qkv matmul prologue
        qkv = matmul_bias_act(h, blk["qkv"], ln=(blk["ln1_g"], blk["ln1_b"]))
        attn = fused_mhsa(qkv.reshape(B, T, 3 * HIDDEN), HEADS, HEAD_DIM, scale)
        h = matmul_bias_act(attn.reshape(B * T, HIDDEN), blk["proj"],
                            residual=h)                   # residual fused
        # MLP sub-block: LN2 fused into fc1 prologue, GELU in fc1 epilogue
        y = matmul_bias_act(h, blk["fc1"], act="gelu",
                            ln=(blk["ln2_g"], blk["ln2_b"]))
        h = matmul_bias_act(y, blk["fc2"], residual=h)    # residual fused

    # final LayerNorm + Linear(HIDDEN, 1) + sigmoid fused, on cls rows only
    cls_out = h.reshape(B, T, HIDDEN)[:, 0, :]
    return ln_head_sigmoid(cls_out, params["norm_g"], params["norm_b"],
                           params["head_w"], params["head_b"])


if __name__ == "__main__":
    key = jax.random.PRNGKey(0)
    pkey, xkey = jax.random.split(key)
    params = init_params(pkey)
    x = jax.random.normal(xkey, (2, IN_CH, IMG, IMG), dtype=jnp.float32)
    out = vit_h_14_forward(params, x)
    out = jax.block_until_ready(out)
    assert out.shape == (2, 1)
    assert bool(jnp.all(jnp.isfinite(out)))
    assert bool(jnp.all((out >= 0.0) & (out <= 1.0)))
    print("KERNEL_OK")
</pallas_src>

<mosaic_0001>
module attributes {stable_mosaic.version = 11 : i64} {
  func.func @_matmul_kernel(%arg0: i32, %arg1: i32, %arg2: i32, %arg3: memref<128x27xbf16, #tpu.memory_space<vmem>>, %arg4: memref<27x128xbf16, #tpu.memory_space<vmem>>, %arg5: memref<1x128xf32, #tpu.memory_space<vmem>>, %arg6: memref<128x128xbf16, #tpu.memory_space<vmem>>) attributes {dimension_semantics = [#tpu.dimension_semantics<parallel>, #tpu.dimension_semantics<parallel>, #tpu.dimension_semantics<arbitrary>], iteration_bounds = array<i64: 1, 1, 1>, scalar_prefetch = 0 : i64, scratch_operands = 0 : i64, tpu.core_type = #tpu.core_type<tc>, window_params = [{transform_indices = @transform_0, window_bounds = array<i64: 128, 27>}, {transform_indices = @transform_1, window_bounds = array<i64: 27, 128>}, {transform_indices = @transform_2, window_bounds = array<i64: 1, 128>}, {transform_indices = @transform_3, window_bounds = array<i64: 128, 128>}]} {
    %c0 = arith.constant 0 : index
    %c0_0 = arith.constant 0 : index
    %0 = vector.load %arg3[%c0, %c0_0] : memref<128x27xbf16, #tpu.memory_space<vmem>>, vector<128x27xbf16>
    %c0_1 = arith.constant 0 : index
    %c0_2 = arith.constant 0 : index
    %1 = vector.load %arg4[%c0_1, %c0_2] : memref<27x128xbf16, #tpu.memory_space<vmem>>, vector<27x128xbf16>
    %cst = arith.constant dense<0.000000e+00> : vector<128x128xf32>
    %2 = tpu.matmul %0, %1, %cst {dimension_numbers = #tpu.dot_dimension_numbers<[1], [0], [0], [1], [0, 0, 1, 1], [], []>} : vector<128x27xbf16>, vector<27x128xbf16>, vector<128x128xf32> -> vector<128x128xf32>
    %c0_3 = arith.constant 0 : index
    %c0_4 = arith.constant 0 : index
    %3 = vector.load %arg5[%c0_3, %c0_4] : memref<1x128xf32, #tpu.memory_space<vmem>>, vector<1x128xf32>
    %4 = vector.broadcast %3 : vector<1x128xf32> to vector<128x128xf32>
    %5 = arith.addf %2, %4 : vector<128x128xf32>
    %cst_5 = arith.constant 0.000000e+00 : f32
    %6 = vector.broadcast %cst_5 : f32 to vector<128x128xf32>
    %7 = arith.maximumf %5, %6 : vector<128x128xf32>
    %8 = arith.truncf %7 : vector<128x128xf32> to vector<128x128xbf16>
    %c0_6 = arith.constant 0 : index
    %c0_7 = arith.constant 0 : index
    %9 = vector.load %arg6[%c0_6, %c0_7] : memref<128x128xbf16, #tpu.memory_space<vmem>>, vector<128x128xbf16>
    tpu.vector_store %arg6[%c0_6, %c0_7], %8 {strides = array<i32>} : memref<128x128xbf16, #tpu.memory_space<vmem>>, vector<128x128xbf16>,
    return
  }
  func.func @transform_0(%arg0: i32, %arg1: i32, %arg2: i32) -> (i32, i32) {
    %c0_i32 = arith.constant 0 : i32
    return %arg0, %arg2 : i32, i32
  }
  func.func @transform_1(%arg0: i32, %arg1: i32, %arg2: i32) -> (i32, i32) {
    %c0_i32 = arith.constant 0 : i32
    return %arg2, %arg1 : i32, i32
  }
  func.func @transform_2(%arg0: i32, %arg1: i32, %arg2: i32) -> (i32, i32) {
    %c0_i32 = arith.constant 0 : i32
    %c0_i32_0 = arith.constant 0 : i32
    return %c0_i32, %arg1 : i32, i32
  }
  func.func @transform_3(%arg0: i32, %arg1: i32, %arg2: i32) -> (i32, i32) {
    %c0_i32 = arith.constant 0 : i32
    return %arg0, %arg1 : i32, i32
  }
}

</mosaic_0001>

<llo_original>
// kernel: tpu_custom_call.1
$region0: #{tpu_custom_call.1}
  #allocation0 [shape = 'u32[]', space=smem, size = 0x4, offset = 0x4, fixed_abs, tag = 'smem constant byte address 0x4 - core index']
  #allocation1 [shape = 'u32[144,128]{1,0:T(1,128)}', space=vmem, size = 0x12000, scoped, tag = 'internal scratch']
  %s0 = inlined_call_operand.vmem [shape: bf16[128,27], index: 0, kind: input, shape index: {}]
  %s1 = inlined_call_operand.vmem [shape: bf16[27,128], index: 1, kind: input, shape index: {}]
  %s2 = inlined_call_operand.vmem [shape: f32[1,128], index: 2, kind: input, shape index: {}]
  %s3 = inlined_call_operand.hbm [shape: bf16[128,128], index: 3, kind: output, shape index: {}]
  %s4 = sld [smem:[#allocation0]]
  $region22: #{tpu_custom_call.1} parent=0
    _
  %s6 = ssub.s32 1, %s4
  %s7 = scalar_select 0, %s6, %s4
  $region1: #{tpu_custom_call.1} parent=0
    #allocation2 [shape = 'u8[32768]{0}', space=vmem, size = 0x8000, scoped, tag = 'output window, operand 0, single buffered']
    #allocation3 [shape = 's32[1]{0}', space=sflag, size = 0x4, scoped, tag = 'scoped memory for tpu_custom_call.1']
    %8 = vsyncpa [#allocation3], 0
    // Predicated region
    $region2: #{tpu_custom_call.1} parent=1 // pred_check
      _
    $region3: #{tpu_custom_call.1} parent=1 // pred_check_branch
      %10 = sbr.rel (0) target = $region5
    $region4: #{tpu_custom_call.1} parent=1 // pred_region
      _
    $region5: #{tpu_custom_call.1} parent=1 // pred_fallthru
      _
    // Predicated region
    $region6: #{tpu_custom_call.1} parent=1 // pred_check
      _
    $region7: #{tpu_custom_call.1} parent=1 // pred_check_branch
      %12 = sbr.rel (0) target = $region9
    $region8: #{tpu_custom_call.1} parent=1 // pred_region
      _
    $region9: #{tpu_custom_call.1} parent=1 // pred_fallthru
      _
    // Predicated region
    $region10: #{tpu_custom_call.1} parent=1 // pred_check
      _
    $region11: #{tpu_custom_call.1} parent=1 // pred_check_branch
      %14 = sbr.rel (0) target = $region13
    $region12: #{tpu_custom_call.1} parent=1 // pred_region
      _
    $region13: #{tpu_custom_call.1} parent=1 // pred_fallthru
      _
    %v16 = vld [vmem:[%s0] sm:$0xf]
    %v17 = vld [vmem:[%s0 + $0x4] sm:$0xf]
    %v18 = vld [vmem:[%s0 + $0x8] sm:$0xf]
    %v19 = vld [vmem:[%s0 + $0xc] sm:$0xf]
    %v20 = vld [vmem:[%s0 + $0x10] sm:$0xf]
    %v21 = vld [vmem:[%s0 + $0x14] sm:$0xf]
    %v22 = vld [vmem:[%s0 + $0x18] sm:$0xf]
    %v23 = vld [vmem:[%s0 + $0x1c] sm:$0xf]
    %v24 = vld [vmem:[%s0 + $0x20] sm:$0xf]
    %v25 = vld [vmem:[%s0 + $0x24] sm:$0xf]
    %v26 = vld [vmem:[%s0 + $0x28] sm:$0xf]
    %v27 = vld [vmem:[%s0 + $0x2c] sm:$0xf]
    %v28 = vld [vmem:[%s0 + $0x30] sm:$0xf]
    %v29 = vld [vmem:[%s0 + $0x34] sm:$0xf]
    %v30 = vld [vmem:[%s0 + $0x38] sm:$0xf]
    %v31 = vld [vmem:[%s0 + $0x3c] sm:$0xf]
    %v32 = vld [vmem:[%s1] sm:$0xf]
    %v33 = vld [vmem:[%s1 + $0x4] sm:$0xf]
    %v34 = vld [vmem:[%s1 + $0x8] sm:$0xf]
    %v35 = vld [vmem:[%s1 + $0xc] sm:$0x3]
    %v36 = vld [vmem:[%s2] sm:$0x1]
    %v38 = vlaneseq
    %v39 = vshrl.u32 %v38, 7
    %v40 = vsub.s32 0, %v39
    %v41 = vrot.slane %v36, %v40
    %v59 = vunpack.c.l.b16 %v16
    %v60 = vunpack.c.l.b16 %v17
    %v61 = vunpack.c.l.b16 %v18
    %v62 = vunpack.c.l.b16 %v19
    %v63 = vunpack.c.l.b16 %v20
    %v64 = vunpack.c.l.b16 %v21
    %v65 = vunpack.c.l.b16 %v22
    %v66 = vunpack.c.l.b16 %v23
    %v67 = vunpack.c.l.b16 %v24
    %v68 = vunpack.c.l.b16 %v25
    %v69 = vunpack.c.l.b16 %v26
    %v70 = vunpack.c.l.b16 %v27
    %v71 = vunpack.c.l.b16 %v28
    %v72 = vunpack.c.l.b16 %v29
    %v73 = vunpack.c.l.b16 %v30
    %v74 = vunpack.c.l.b16 %v31
    %v75 = vpack.c.b16 %v60, %v59
    %v76 = vpack.c.b16 %v62, %v61
    %v77 = vpack.c.b16 %v64, %v63
    %v78 = vpack.c.b16 %v66, %v65
    %v79 = vpack.c.b16 %v68, %v67
    %v80 = vpack.c.b16 %v70, %v69
    %v81 = vpack.c.b16 %v72, %v71
    %v82 = vpack.c.b16 %v74, %v73
    %v87 = vunpack.c.l.b16 %v32
    %v88 = vunpack.c.l.b16 %v33
    %v89 = vunpack.c.l.b16 %v34
    %v90 = vunpack.c.l.b16 %v35
    %v91 = vpack.c.b16 %v88, %v87
    %v92 = vpack.c.b16 %v90, %v89
    %vm94 = vcmask 220160
    %v96 = vsel %vm94, %v75, 0
    %v99 = vsel %vm94, %v76, 0
    %v102 = vsel %vm94, %v77, 0
    %v105 = vsel %vm94, %v78, 0
    %v108 = vsel %vm94, %v79, 0
    %v111 = vsel %vm94, %v80, 0
    %v114 = vsel %vm94, %v81, 0
    %v117 = vsel %vm94, %v82, 0
    %vm119 = vcmask 1044480
    %vm120 = vcmask 1045504
    %v121 = vsel %vm119, 4294967295, 65535
    %v122 = vsel %vm120, %v121, 0
    %v124 = vand.u32 %v92, %v122
    %126 = vmatprep.subr.bf16.mxu0 0
    %127 = vmatpush1.bf16.msra.mxu0 0
    %128 = vmatprep.subr.bf16.mxu0 0
    %129 = vmatpush1.bf16.msra.mxu0 0
    %130 = vmatprep.subr.bf16.mxu0 0
    %131 = vmatpush1.bf16.msra.mxu0 0
    %132 = vmatprep.subr.bf16.mxu0 0
    %133 = vmatpush1.bf16.msra.mxu0 0
    %134 = vmatprep.subr.bf16.mxu0 0
    %135 = vmatpush1.bf16.msra.mxu0 0
    %136 = vmatprep.subr.bf16.mxu0 0
    %137 = vmatpush1.bf16.msra.mxu0 0
    %138 = vmatprep.subr.bf16.mxu0 0
    %139 = vmatpush1.bf16.msra.mxu0 %v124
    %140 = vmatprep.subr.bf16.mxu0 0
    %141 = vmatpush1.bf16.msra.mxu0 %v91
    %142 = vmatprep.subr.bf16.mxu0 0
    %143 = vmatpush2.bf16.msra.mxu0 0
    %144 = vmatprep.subr.bf16.mxu0 0
    %145 = vmatpush2.bf16.msra.mxu0 0
    %146 = vmatprep.subr.bf16.mxu0 0
    %147 = vmatpush2.bf16.msra.mxu0 0
    %148 = vmatprep.subr.bf16.mxu0 0
    %149 = vmatpush2.bf16.msra.mxu0 0
    %150 = vmatprep.subr.bf16.mxu0 0
    %151 = vmatpush2.bf16.msra.mxu0 0
    %152 = vmatprep.subr.bf16.mxu0 0
    %153 = vmatpush2.bf16.msra.mxu0 0
    %154 = vmatprep.subr.bf16.mxu0 0
    %155 = vmatpush2.bf16.msra.mxu0 0
    %156 = vmatprep.subr.bf16.mxu0 0
    %157 = vmatpush2.bf16.msra.mxu0 0
    %158 = vmatprep.mubr.bf16.mxu0 0
    %159 = vmatmul.mubr.bf16.gmra.mxu0 %v96
    %v160 = vpop.f32.mrf.mxu0
    %v161 = vadd.f32 %v41, %v160
    %v162 = vpop.f32.mrf.mxu0
    %v163 = vpop.f32.mrf.mxu0
    %v164 = vadd.f32 %v41, %v163
    %v165 = vpop.f32.mrf.mxu0
    %166 = vmatprep.mubr.bf16.mxu0 0
    %167 = vmatmul.mubr.bf16.gmra.mxu0 %v99
    %v168 = vpop.f32.mrf.mxu0
    %v169 = vadd.f32 %v41, %v168
    %v170 = vpop.f32.mrf.mxu0
    %v171 = vpop.f32.mrf.mxu0
    %v172 = vadd.f32 %v41, %v171
    %v173 = vpop.f32.mrf.mxu0
    %174 = vmatprep.mubr.bf16.mxu0 0
    %175 = vmatmul.mubr.bf16.gmra.mxu0 %v102
    %v176 = vpop.f32.mrf.mxu0
    %v177 = vadd.f32 %v41, %v176
    %v178 = vpop.f32.mrf.mxu0
    %v179 = vpop.f32.mrf.mxu0
    %v180 = vadd.f32 %v41, %v179
    %v181 = vpop.f32.mrf.mxu0
    %182 = vmatprep.mubr.bf16.mxu0 0
    %183 = vmatmul.mubr.bf16.gmra.mxu0 %v105
    %v184 = vpop.f32.mrf.mxu0
    %v185 = vadd.f32 %v41, %v184
    %v186 = vpop.f32.mrf.mxu0
    %v187 = vpop.f32.mrf.mxu0
    %v188 = vadd.f32 %v41, %v187
    %v189 = vpop.f32.mrf.mxu0
    %190 = vmatprep.mubr.bf16.mxu0 0
    %191 = vmatmul.mubr.bf16.gmra.mxu0 %v108
    %v192 = vpop.f32.mrf.mxu0
    %v193 = vadd.f32 %v41, %v192
    %v194 = vpop.f32.mrf.mxu0
    %v195 = vpop.f32.mrf.mxu0
    %v196 = vadd.f32 %v41, %v195
    %v197 = vpop.f32.mrf.mxu0
    %198 = vmatprep.mubr.bf16.mxu0 0
    %199 = vmatmul.mubr.bf16.gmra.mxu0 %v111
    %v200 = vpop.f32.mrf.mxu0
    %v201 = vadd.f32 %v41, %v200
    %v202 = vpop.f32.mrf.mxu0
    %v203 = vpop.f32.mrf.mxu0
    %v204 = vadd.f32 %v41, %v203
    %v205 = vpop.f32.mrf.mxu0
    %206 = vmatprep.mubr.bf16.mxu0 0
    %207 = vmatmul.mubr.bf16.gmra.mxu0 %v114
    %v208 = vpop.f32.mrf.mxu0
    %v209 = vadd.f32 %v41, %v208
    %v210 = vpop.f32.mrf.mxu0
    %v211 = vpop.f32.mrf.mxu0
    %v212 = vadd.f32 %v41, %v211
    %v213 = vpop.f32.mrf.mxu0
    %214 = vmatprep.mubr.bf16.mxu0 0
    %215 = vmatmul.mubr.bf16.gmra.mxu0 %v117
    %v216 = vpop.f32.mrf.mxu0
    %v217 = vadd.f32 %v41, %v216
    %v218 = vpop.f32.mrf.mxu0
    %v219 = vpop.f32.mrf.mxu0
    %v220 = vadd.f32 %v41, %v219
    %v221 = vpop.f32.mrf.mxu0
    %222 = vdwg.mxu0
    %v223 = vmax.f32 %v161, 0.0
    %v224 = vmax.f32 %v164, 0.0
    %v225 = vmax.f32 %v169, 0.0
    %v226 = vmax.f32 %v172, 0.0
    %v227 = vmax.f32 %v177, 0.0
    %v228 = vmax.f32 %v180, 0.0
    %v229 = vmax.f32 %v185, 0.0
    %v230 = vmax.f32 %v188, 0.0
    %v231 = vmax.f32 %v193, 0.0
    %v232 = vmax.f32 %v196, 0.0
    %v233 = vmax.f32 %v201, 0.0
    %v234 = vmax.f32 %v204, 0.0
    %v235 = vmax.f32 %v209, 0.0
    %v236 = vmax.f32 %v212, 0.0
    %v237 = vmax.f32 %v217, 0.0
    %v238 = vmax.f32 %v220, 0.0
    %v239 = vpack.c.bf16 %v224, %v223
    %v240 = vpack.c.bf16 %v226, %v225
    %v241 = vpack.c.bf16 %v228, %v227
    %v242 = vpack.c.bf16 %v230, %v229
    %v243 = vpack.c.bf16 %v232, %v231
    %v244 = vpack.c.bf16 %v234, %v233
    %v245 = vpack.c.bf16 %v236, %v235
    %v246 = vpack.c.bf16 %v238, %v237
    %v255 = vunpack.c.l.b16 %v239
    %v256 = vunpack.c.h.b16 %v239
    %v257 = vunpack.c.l.b16 %v240
    %v258 = vunpack.c.h.b16 %v240
    %v259 = vunpack.c.l.b16 %v241
    %v260 = vunpack.c.h.b16 %v241
    %v261 = vunpack.c.l.b16 %v242
    %v262 = vunpack.c.h.b16 %v242
    %v263 = vunpack.c.l.b16 %v243
    %v264 = vunpack.c.h.b16 %v243
    %v265 = vunpack.c.l.b16 %v244
    %v266 = vunpack.c.h.b16 %v244
    %v267 = vunpack.c.l.b16 %v245
    %v268 = vunpack.c.h.b16 %v245
    %v269 = vunpack.c.l.b16 %v246
    %v270 = vunpack.c.h.b16 %v246
    %v271 = vpack.c.b16 %v255, %v255
    %v272 = vpack.c.b16 %v256, %v256
    %v273 = vpack.c.b16 %v257, %v257
    %v274 = vpack.c.b16 %v258, %v258
    %v275 = vpack.c.b16 %v259, %v259
    %v276 = vpack.c.b16 %v260, %v260
    %v277 = vpack.c.b16 %v261, %v261
    %v278 = vpack.c.b16 %v262, %v262
    %v279 = vpack.c.b16 %v263, %v263
    %v280 = vpack.c.b16 %v264, %v264
    %v281 = vpack.c.b16 %v265, %v265
    %v282 = vpack.c.b16 %v266, %v266
    %v283 = vpack.c.b16 %v267, %v267
    %v284 = vpack.c.b16 %v268, %v268
    %v285 = vpack.c.b16 %v269, %v269
    %v286 = vpack.c.b16 %v270, %v270
    %303 = vst [vmem:[#allocation2] sm:$0xf] %v271
    %304 = vst [vmem:[#allocation2 + $0x4] sm:$0xf] %v272
    %305 = vst [vmem:[#allocation2 + $0x8] sm:$0xf] %v273
    %306 = vst [vmem:[#allocation2 + $0xc] sm:$0xf] %v274
    %307 = vst [vmem:[#allocation2 + $0x10] sm:$0xf] %v275
    %308 = vst [vmem:[#allocation2 + $0x14] sm:$0xf] %v276
    %309 = vst [vmem:[#allocation2 + $0x18] sm:$0xf] %v277
    %310 = vst [vmem:[#allocation2 + $0x1c] sm:$0xf] %v278
    %311 = vst [vmem:[#allocation2 + $0x20] sm:$0xf] %v279
    %312 = vst [vmem:[#allocation2 + $0x24] sm:$0xf] %v280
    %313 = vst [vmem:[#allocation2 + $0x28] sm:$0xf] %v281
    %314 = vst [vmem:[#allocation2 + $0x2c] sm:$0xf] %v282
    %315 = vst [vmem:[#allocation2 + $0x30] sm:$0xf] %v283
    %316 = vst [vmem:[#allocation2 + $0x34] sm:$0xf] %v284
    %317 = vst [vmem:[#allocation2 + $0x38] sm:$0xf] %v285
    %318 = vst [vmem:[#allocation2 + $0x3c] sm:$0xf] %v286
    // Predicated region
    $region14: #{tpu_custom_call.1} parent=1 // pred_check
      _
    $region15: #{tpu_custom_call.1} parent=1 // pred_check_branch
      %320 = sbr.rel (0) target = $region17
    $region16: #{tpu_custom_call.1} parent=1 // pred_region
      %s322 = ssub.s32 1024, 1024
      %323 = vsyncadd [#allocation3], %s322
      %s324 = sshll.u32 [#allocation2], 4
      %s325 = int_to_ptr.vmem [resolvable:$true] %s324
      %330 = dma.vmem_to_hbm [thread:$0]  %s325, 1024, %s3, [#allocation3], 64, 64, 4
    $region17: #{tpu_custom_call.1} parent=1 // pred_fallthru
      _
    // Predicated region
    $region18: #{tpu_custom_call.1} parent=1 // pred_check
      _
    $region19: #{tpu_custom_call.1} parent=1 // pred_check_branch
      %332 = sbr.rel (0) target = $region21
    $region20: #{tpu_custom_call.1} parent=1 // pred_region
      %333 = dma.done [#allocation3], 1024
    $region21: #{tpu_custom_call.1} parent=1 // pred_fallthru
      _
    %334 = vsyncpa [#allocation3], 1

</llo_original>
